<compile_context>
chip_gen: v7x
topology: tpu7x:2x2x1
jax: 0.10.0
libtpu: 0.0.40
codegen_flags: <defaults>
</compile_context>

<pallas_src>
import functools

import jax
import jax.numpy as jnp
import numpy as np
from jax.experimental import pallas as pl
from jax.experimental.pallas import tpu as pltpu


def _sigmoid(x):
    # Exact sigmoid via a single EUP transcendental: sigmoid(x) = 0.5*tanh(0.5x)+0.5
    return 0.5 * jnp.tanh(0.5 * x) + 0.5


def _red_kernel(xT_ref, w1_ref, b1_ref, w2_ref, b2_ref, w3_ref, b3_ref, o_ref):
    # xT_ref: (n_in, tb) bf16 -- batch on the 128-lane axis. No f32 upcast of x.
    xT = xT_ref[...]

    # Layer 1: (15, n_in) bf16 x (n_in, tb) bf16 -> (15, tb) f32 acc
    h1 = jnp.dot(w1_ref[...], xT, preferred_element_type=jnp.float32)
    h1 = _sigmoid(h1 + b1_ref[...]).astype(jnp.bfloat16)

    # Layer 2: (8, 15) x (15, tb) -> (8, tb)
    h2 = jnp.dot(w2_ref[...], h1, preferred_element_type=jnp.float32)
    h2 = _sigmoid(h2 + b2_ref[...]).astype(jnp.bfloat16)

    # Layer 3: (1, 8) x (8, tb) -> (1, tb); lane-dense store
    h3 = jnp.dot(w3_ref[...], h2, preferred_element_type=jnp.float32)
    o_ref[...] = _sigmoid(h3 + b3_ref[...]).astype(o_ref.dtype)


def _round_up(x, m):
    return ((x + m - 1) // m) * m


def _pick_tb(B, cap=32768):
    """Batch (lane-axis) tile: multiple of 512, as large as possible up to
    `cap`, while keeping >=2 grid tiles when the batch allows it (v7x dual-TC).
    cap=32768 keeps the per-step footprint (~12 MiB) inside every generation's
    scoped-VMEM budget (with the explicit 32 MiB limit below)."""
    if B <= 512:
        return 512
    half = _round_up((B + 1) // 2, 512)
    return max(512, min(cap, half))


def red_forward_t(xT, params, *, tb=None):
    """Fused 3-layer MLP on pre-transposed input.

    xT: (n_in, B) array (any float dtype; cast to bf16 if needed).
    Returns (1, B) float32. Preferred entry point for large batches: callers
    that can produce (n_in, B) bf16 upstream pay zero wrapper HBM traffic.
    """
    w1, b1, w2, b2, w3, b3 = params
    n_in, B = xT.shape

    xT = xT.astype(jnp.bfloat16)
    # Tiny weight/bias casts (once, a few hundred bytes): bf16 weights feed the
    # MXU natively; biases stay f32 for the f32 accumulate.
    w1b, w2b, w3b = (w.astype(jnp.bfloat16) for w in (w1, w2, w3))
    b1f, b2f, b3f = (b.astype(jnp.float32) for b in (b1, b2, b3))

    if tb is None:
        tb = _pick_tb(B)
    num_tiles = pl.cdiv(B, tb)

    # Weights/biases: full-array constant-index blocks, resident across the grid.
    full = lambda a: pl.BlockSpec(a.shape, lambda i: (0,) * a.ndim)

    out = pl.pallas_call(
        _red_kernel,
        out_shape=jax.ShapeDtypeStruct((1, B), jnp.float32),
        grid_spec=pltpu.PrefetchScalarGridSpec(
            num_scalar_prefetch=0,
            grid=(num_tiles,),
            in_specs=[pl.BlockSpec((n_in, tb), lambda i: (0, i)),
                      full(w1b), full(b1f), full(w2b), full(b2f),
                      full(w3b), full(b3f)],
            out_specs=pl.BlockSpec((1, tb), lambda i: (0, i)),
        ),
        compiler_params=pltpu.CompilerParams(
            dimension_semantics=("parallel",),
            vmem_limit_bytes=32 * 1024 * 1024,
        ),
    )(xT, w1b, b1f, w2b, b2f, w3b, b3f)
    return out


@functools.partial(jax.jit, static_argnames=("tb",))
def red_forward(x, params, *, tb=None):
    """PyTorch-layout convenience wrapper. x: (B, n_in) float. Returns (B, 1) f32.
    The transpose+bf16 cast fuse into one XLA pass under jit; for very large
    batches prefer feeding (n_in, B) bf16 directly to red_forward_t."""
    xT = jnp.transpose(x).astype(jnp.bfloat16)   # (n_in, B)
    out = red_forward_t(xT, params, tb=tb)       # (1, B)
    return jnp.transpose(out)                    # (B, 1)


def init_red_params(key, n_entradas):
    """Deterministic init mimicking nn.Linear default (uniform +-1/sqrt(fan_in)).
    Weights in PyTorch (out, in) layout; biases as (out, 1) columns."""
    dims = [(n_entradas, 15), (15, 8), (8, 1)]
    params = []
    for (fan_in, fan_out) in dims:
        key, kw, kb = jax.random.split(key, 3)
        bound = 1.0 / np.sqrt(fan_in)
        w = jax.random.uniform(kw, (fan_out, fan_in), jnp.float32, -bound, bound)
        b = jax.random.uniform(kb, (fan_out, 1), jnp.float32, -bound, bound)
        params += [w, b]
    return tuple(params)


def red_reference(x, params):
    """Pure-JAX f32 reference matching the PyTorch module semantics."""
    w1, b1, w2, b2, w3, b3 = params
    h1 = jax.nn.sigmoid(x @ w1.T + b1.T)
    h2 = jax.nn.sigmoid(h1 @ w2.T + b2.T)
    return jax.nn.sigmoid(h2 @ w3.T + b3.T)


if __name__ == "__main__":
    key = jax.random.PRNGKey(0)
    n_entradas = 10      # X_train.shape[1] in the original script
    batch = 8

    key, kx = jax.random.split(key)
    x = jax.random.normal(kx, (batch, n_entradas), jnp.float32)
    params = init_red_params(key, n_entradas)

    out = jax.block_until_ready(red_forward(x, params))

    # f32 reference; kernel uses bf16 x / weights / inter-layer activations,
    # so use a correspondingly loose tolerance (outputs live in (0,1)).
    ref = red_reference(x, params)
    np.testing.assert_allclose(np.asarray(out), np.asarray(ref),
                               rtol=2e-2, atol=2e-2)
    assert out.shape == (batch, 1)
    print("KERNEL_OK")
</pallas_src>

<mosaic_0001>
module attributes {stable_mosaic.version = 11 : i64} {
  func.func @_red_kernel(%arg0: i32, %arg1: memref<10x512xbf16, #tpu.memory_space<vmem>>, %arg2: memref<15x10xbf16, #tpu.memory_space<vmem>>, %arg3: memref<15x1xf32, #tpu.memory_space<vmem>>, %arg4: memref<8x15xbf16, #tpu.memory_space<vmem>>, %arg5: memref<8x1xf32, #tpu.memory_space<vmem>>, %arg6: memref<1x8xbf16, #tpu.memory_space<vmem>>, %arg7: memref<1x1xf32, #tpu.memory_space<vmem>>, %arg8: memref<1x512xf32, #tpu.memory_space<vmem>>) attributes {dimension_semantics = [#tpu.dimension_semantics<parallel>], iteration_bounds = array<i64: 1>, scalar_prefetch = 0 : i64, scratch_operands = 0 : i64, tpu.core_type = #tpu.core_type<tc>, window_params = [{transform_indices = @transform_0, window_bounds = array<i64: 10, 512>}, {pipeline_mode = #tpu.pipeline_mode<synchronous>, transform_indices = @transform_1, window_bounds = array<i64: 15, 10>}, {pipeline_mode = #tpu.pipeline_mode<synchronous>, transform_indices = @transform_2, window_bounds = array<i64: 15, 1>}, {pipeline_mode = #tpu.pipeline_mode<synchronous>, transform_indices = @transform_3, window_bounds = array<i64: 8, 15>}, {pipeline_mode = #tpu.pipeline_mode<synchronous>, transform_indices = @transform_4, window_bounds = array<i64: 8, 1>}, {pipeline_mode = #tpu.pipeline_mode<synchronous>, transform_indices = @transform_5, window_bounds = array<i64: 1, 8>}, {pipeline_mode = #tpu.pipeline_mode<synchronous>, transform_indices = @transform_6, window_bounds = array<i64: 1, 1>}, {transform_indices = @transform_7, window_bounds = array<i64: 1, 512>}]} {
    %c0 = arith.constant 0 : index
    %c0_0 = arith.constant 0 : index
    %0 = vector.load %arg1[%c0, %c0_0] : memref<10x512xbf16, #tpu.memory_space<vmem>>, vector<10x512xbf16>
    %c0_1 = arith.constant 0 : index
    %c0_2 = arith.constant 0 : index
    %1 = vector.load %arg2[%c0_1, %c0_2] : memref<15x10xbf16, #tpu.memory_space<vmem>>, vector<15x10xbf16>
    %cst = arith.constant dense<0.000000e+00> : vector<15x512xf32>
    %2 = tpu.matmul %1, %0, %cst {dimension_numbers = #tpu.dot_dimension_numbers<[1], [0], [0], [1], [0, 0, 1, 1], [], []>} : vector<15x10xbf16>, vector<10x512xbf16>, vector<15x512xf32> -> vector<15x512xf32>
    %c0_3 = arith.constant 0 : index
    %c0_4 = arith.constant 0 : index
    %3 = vector.load %arg3[%c0_3, %c0_4] : memref<15x1xf32, #tpu.memory_space<vmem>>, vector<15x1xf32>
    %4 = vector.broadcast %3 : vector<15x1xf32> to vector<15x512xf32>
    %5 = arith.addf %2, %4 : vector<15x512xf32>
    %cst_5 = arith.constant 5.000000e-01 : f32
    %6 = vector.broadcast %cst_5 : f32 to vector<15x512xf32>
    %7 = arith.mulf %6, %5 : vector<15x512xf32>
    %8 = math.tanh %7 : vector<15x512xf32>
    %cst_6 = arith.constant 5.000000e-01 : f32
    %9 = vector.broadcast %cst_6 : f32 to vector<15x512xf32>
    %10 = arith.mulf %9, %8 : vector<15x512xf32>
    %cst_7 = arith.constant 5.000000e-01 : f32
    %11 = vector.broadcast %cst_7 : f32 to vector<15x512xf32>
    %12 = arith.addf %10, %11 : vector<15x512xf32>
    %13 = arith.truncf %12 : vector<15x512xf32> to vector<15x512xbf16>
    %c0_8 = arith.constant 0 : index
    %c0_9 = arith.constant 0 : index
    %14 = vector.load %arg4[%c0_8, %c0_9] : memref<8x15xbf16, #tpu.memory_space<vmem>>, vector<8x15xbf16>
    %cst_10 = arith.constant dense<0.000000e+00> : vector<8x512xf32>
    %15 = tpu.matmul %14, %13, %cst_10 {dimension_numbers = #tpu.dot_dimension_numbers<[1], [0], [0], [1], [0, 0, 1, 1], [], []>} : vector<8x15xbf16>, vector<15x512xbf16>, vector<8x512xf32> -> vector<8x512xf32>
    %c0_11 = arith.constant 0 : index
    %c0_12 = arith.constant 0 : index
    %16 = vector.load %arg5[%c0_11, %c0_12] : memref<8x1xf32, #tpu.memory_space<vmem>>, vector<8x1xf32>
    %17 = vector.broadcast %16 : vector<8x1xf32> to vector<8x512xf32>
    %18 = arith.addf %15, %17 : vector<8x512xf32>
    %cst_13 = arith.constant 5.000000e-01 : f32
    %19 = vector.broadcast %cst_13 : f32 to vector<8x512xf32>
    %20 = arith.mulf %19, %18 : vector<8x512xf32>
    %21 = math.tanh %20 : vector<8x512xf32>
    %cst_14 = arith.constant 5.000000e-01 : f32
    %22 = vector.broadcast %cst_14 : f32 to vector<8x512xf32>
    %23 = arith.mulf %22, %21 : vector<8x512xf32>
    %cst_15 = arith.constant 5.000000e-01 : f32
    %24 = vector.broadcast %cst_15 : f32 to vector<8x512xf32>
    %25 = arith.addf %23, %24 : vector<8x512xf32>
    %26 = arith.truncf %25 : vector<8x512xf32> to vector<8x512xbf16>
    %c0_16 = arith.constant 0 : index
    %c0_17 = arith.constant 0 : index
    %27 = vector.load %arg6[%c0_16, %c0_17] : memref<1x8xbf16, #tpu.memory_space<vmem>>, vector<1x8xbf16>
    %cst_18 = arith.constant dense<0.000000e+00> : vector<1x512xf32>
    %28 = tpu.matmul %27, %26, %cst_18 {dimension_numbers = #tpu.dot_dimension_numbers<[1], [0], [0], [1], [0, 0, 1, 1], [], []>} : vector<1x8xbf16>, vector<8x512xbf16>, vector<1x512xf32> -> vector<1x512xf32>
    %c0_19 = arith.constant 0 : index
    %c0_20 = arith.constant 0 : index
    %29 = vector.load %arg7[%c0_19, %c0_20] : memref<1x1xf32, #tpu.memory_space<vmem>>, vector<1x1xf32>
    %30 = vector.broadcast %29 : vector<1x1xf32> to vector<1x512xf32>
    %31 = arith.addf %28, %30 : vector<1x512xf32>
    %cst_21 = arith.constant 5.000000e-01 : f32
    %32 = vector.broadcast %cst_21 : f32 to vector<1x512xf32>
    %33 = arith.mulf %32, %31 : vector<1x512xf32>
    %34 = math.tanh %33 : vector<1x512xf32>
    %cst_22 = arith.constant 5.000000e-01 : f32
    %35 = vector.broadcast %cst_22 : f32 to vector<1x512xf32>
    %36 = arith.mulf %35, %34 : vector<1x512xf32>
    %cst_23 = arith.constant 5.000000e-01 : f32
    %37 = vector.broadcast %cst_23 : f32 to vector<1x512xf32>
    %38 = arith.addf %36, %37 : vector<1x512xf32>
    %c0_24 = arith.constant 0 : index
    %c0_25 = arith.constant 0 : index
    %39 = vector.load %arg8[%c0_24, %c0_25] : memref<1x512xf32, #tpu.memory_space<vmem>>, vector<1x512xf32>
    tpu.vector_store %arg8[%c0_24, %c0_25], %38 {strides = array<i32>} : memref<1x512xf32, #tpu.memory_space<vmem>>, vector<1x512xf32>,
    return
  }
  func.func @transform_0(%arg0: i32) -> (i32, i32) {
    %c0_i32 = arith.constant 0 : i32
    %c0_i32_0 = arith.constant 0 : i32
    return %c0_i32, %arg0 : i32, i32
  }
  func.func @transform_1(%arg0: i32) -> (i32, i32) {
    %c0_i32 = arith.constant 0 : i32
    %c0_i32_0 = arith.constant 0 : i32
    %c0_i32_1 = arith.constant 0 : i32
    return %c0_i32, %c0_i32_0 : i32, i32
  }
  func.func @transform_2(%arg0: i32) -> (i32, i32) {
    %c0_i32 = arith.constant 0 : i32
    %c0_i32_0 = arith.constant 0 : i32
    %c0_i32_1 = arith.constant 0 : i32
    return %c0_i32, %c0_i32_0 : i32, i32
  }
  func.func @transform_3(%arg0: i32) -> (i32, i32) {
    %c0_i32 = arith.constant 0 : i32
    %c0_i32_0 = arith.constant 0 : i32
    %c0_i32_1 = arith.constant 0 : i32
    return %c0_i32, %c0_i32_0 : i32, i32
  }
  func.func @transform_4(%arg0: i32) -> (i32, i32) {
    %c0_i32 = arith.constant 0 : i32
    %c0_i32_0 = arith.constant 0 : i32
    %c0_i32_1 = arith.constant 0 : i32
    return %c0_i32, %c0_i32_0 : i32, i32
  }
  func.func @transform_5(%arg0: i32) -> (i32, i32) {
    %c0_i32 = arith.constant 0 : i32
    %c0_i32_0 = arith.constant 0 : i32
    %c0_i32_1 = arith.constant 0 : i32
    return %c0_i32, %c0_i32_0 : i32, i32
  }
  func.func @transform_6(%arg0: i32) -> (i32, i32) {
    %c0_i32 = arith.constant 0 : i32
    %c0_i32_0 = arith.constant 0 : i32
    %c0_i32_1 = arith.constant 0 : i32
    return %c0_i32, %c0_i32_0 : i32, i32
  }
  func.func @transform_7(%arg0: i32) -> (i32, i32) {
    %c0_i32 = arith.constant 0 : i32
    %c0_i32_0 = arith.constant 0 : i32
    return %c0_i32, %arg0 : i32, i32
  }
}

</mosaic_0001>

<llo_original>
// kernel: red_forward.1
$region0: #{red_forward.1}
  #allocation0 [shape = 'u32[]', space=smem, size = 0x4, offset = 0x4, fixed_abs, tag = 'smem constant byte address 0x4 - core index']
  #allocation1 [shape = 'u32[144,128]{1,0:T(1,128)}', space=vmem, size = 0x12000, scoped, tag = 'internal scratch']
  #allocation2 [shape = 'f32[1,1]{1,0:T(1,128)S(1)}', space=vmem, size = 0x200, scoped, tag = 'scoped memory for red_forward.1']
  %s0 = inlined_call_operand.vmem [shape: bf16[10,8], index: 0, kind: input, shape index: {}]
  %s1 = inlined_call_operand.vmem [shape: bf16[15,10], index: 1, kind: input, shape index: {}]
  %s2 = inlined_call_operand.vmem [shape: f32[15,1], index: 2, kind: input, shape index: {}]
  %s3 = inlined_call_operand.vmem [shape: bf16[8,15], index: 3, kind: input, shape index: {}]
  %s4 = inlined_call_operand.vmem [shape: f32[8,1], index: 4, kind: input, shape index: {}]
  %s5 = inlined_call_operand.vmem [shape: bf16[1,8], index: 5, kind: input, shape index: {}]
  %s6 = inlined_call_operand.<no memory space> [shape: f32[1,1], index: 6, kind: input, shape index: {}]
  %s7 = inlined_call_operand.hbm [shape: f32[1,8], index: 7, kind: output, shape index: {}]
  %s8 = sld [smem:[#allocation0]]
  $region79: #{red_forward.1} parent=0
    _
  %s10 = ssub.s32 1, %s8
  %s11 = scalar_select 0, %s10, %s8
  %v12 = vstv %s6
  %13 = vst [vmem:[#allocation2] sm:$0x1] %v12
  $region1: #{red_forward.1} parent=0
    #allocation3 [shape = 'u8[16384]{0}', space=vmem, size = 0x4000, scoped, tag = 'input window, operand 0, single buffered']
    #allocation4 [shape = 'u8[2048]{0}', space=vmem, size = 0x800, scoped, tag = 'output window, operand 0, single buffered']
    #allocation5 [shape = 's32[1]{0}', space=sflag, size = 0x4, scoped, tag = 'scoped memory for red_forward.1']
    %14 = vsyncpa [#allocation5], 0
    // Predicated region
    $region2: #{red_forward.1} parent=1 // pred_check
      _
    $region3: #{red_forward.1} parent=1 // pred_check_branch
      %16 = sbr.rel (0) target = $region5
    $region4: #{red_forward.1} parent=1 // pred_region
      // Predicated region
      $region6: #{red_forward.1} parent=4 // pred_check
        _
      $region7: #{red_forward.1} parent=4 // pred_check_branch
        %18 = sbr.rel (0) target = $region9
      $region8: #{red_forward.1} parent=4 // pred_region
        // Predicated region
        $region10: #{red_forward.1} parent=8 // pred_check
          _
        $region11: #{red_forward.1} parent=8 // pred_check_branch
          %20 = sbr.rel target = $region13
        $region12: #{red_forward.1} parent=8 // pred_region
          // Predicated region
          $region25: #{red_forward.1} parent=12 // pred_check
            _
          $region26: #{red_forward.1} parent=12 // pred_check_branch
            %37 = sbr.rel (0) target = $region28
          $region27: #{red_forward.1} parent=12 // pred_region
            loop: start=0, step=1, limit=1
            $region29: #{red_forward.1} parent=27 // loop_pre_header
              _
            $region30: #{red_forward.1} parent=27 // loop_header
              %s39 = sphi 0, %s43
              %p40 = scmp.ge.s32.totalorder %s39, 1
              %s44 = sphi %s0, %s0
              %s45 = sphi [#allocation3], [#allocation3]
            $region31: #{red_forward.1} parent=27 // loop_header_branch
              %42 = sbr.rel (%p40) target = $region35
            $region32: #{red_forward.1} parent=27 // loop_body
              _
            $region33: #{red_forward.1} parent=27 // loop_footer
              %s43 = sadd.s32 1, %s39
            $region34: #{red_forward.1} parent=27 // loop_footer_branch
              %38 = sbr.rel target = $region30
            $region35: #{red_forward.1} parent=27 // loop_exit
              _
            loop: start=0, step=1, limit=1
            $region36: #{red_forward.1} parent=27 // loop_pre_header
              _
            $region37: #{red_forward.1} parent=27 // loop_header
              %s48 = sphi 0, %s52
              %p49 = scmp.ge.s32.totalorder %s48, 1
              %s53 = sphi %s0, %s0
              %s54 = sphi [#allocation3], [#allocation3]
            $region38: #{red_forward.1} parent=27 // loop_header_branch
              %51 = sbr.rel (%p49) target = $region42
            $region39: #{red_forward.1} parent=27 // loop_body
              %v55 = vld [vmem:[%s53] sm:$0xf]
              %56 = vst [vmem:[%s54] sm:$0xf] %v55
              %v57 = vld [vmem:[%s53 + $0x4] sm:$0xf]
              %58 = vst [vmem:[%s54 + $0x10] sm:$0xf] %v57
            $region40: #{red_forward.1} parent=27 // loop_footer
              %s52 = sadd.s32 1, %s48
            $region41: #{red_forward.1} parent=27 // loop_footer_branch
              %47 = sbr.rel target = $region37
            $region42: #{red_forward.1} parent=27 // loop_exit
              _
          $region28: #{red_forward.1} parent=12 // pred_fallthru
            _
        $region13: #{red_forward.1} parent=8 // pred_fallthru
          _
        // Predicated region
        $region14: #{red_forward.1} parent=8 // pred_check
          _
        $region15: #{red_forward.1} parent=8 // pred_check_branch
          %22 = sbr.rel (0) target = $region17
        $region16: #{red_forward.1} parent=8 // pred_region
          loop: start=0, step=1, limit=1
          $region18: #{red_forward.1} parent=16 // loop_pre_header
            _
          $region19: #{red_forward.1} parent=16 // loop_header
            %s25 = sphi 0, %s29
            %p26 = scmp.ge.s32.totalorder %s25, 1
            %s30 = sphi %s0, %s0
            %s31 = sphi [#allocation3], [#allocation3]
          $region20: #{red_forward.1} parent=16 // loop_header_branch
            %28 = sbr.rel (%p26) target = $region24
          $region21: #{red_forward.1} parent=16 // loop_body
            %v32 = vld [vmem:[%s30] sm:$0xf]
            %33 = vst [vmem:[%s31] sm:$0xf] %v32
            %v34 = vld [vmem:[%s30 + $0x4] sm:$0xf]
            %35 = vst [vmem:[%s31 + $0x10] sm:$0xf] %v34
          $region22: #{red_forward.1} parent=16 // loop_footer
            %s29 = sadd.s32 1, %s25
          $region23: #{red_forward.1} parent=16 // loop_footer_branch
            %24 = sbr.rel target = $region19
          $region24: #{red_forward.1} parent=16 // loop_exit
            _
        $region17: #{red_forward.1} parent=8 // pred_fallthru
          _
      $region9: #{red_forward.1} parent=4 // pred_fallthru
        _
      %59 = vnop
    $region5: #{red_forward.1} parent=1 // pred_fallthru
      _
    // Predicated region
    $region43: #{red_forward.1} parent=1 // pred_check
      _
    $region44: #{red_forward.1} parent=1 // pred_check_branch
      %61 = sbr.rel (0) target = $region46
    $region45: #{red_forward.1} parent=1 // pred_region
      _
    $region46: #{red_forward.1} parent=1 // pred_fallthru
      _
    // Predicated region
    $region47: #{red_forward.1} parent=1 // pred_check
      _
    $region48: #{red_forward.1} parent=1 // pred_check_branch
      %63 = sbr.rel (0) target = $region50
    $region49: #{red_forward.1} parent=1 // pred_region
      _
    $region50: #{red_forward.1} parent=1 // pred_fallthru
      _
    // Predicated region
    $region51: #{red_forward.1} parent=1 // pred_check
      _
    $region52: #{red_forward.1} parent=1 // pred_check_branch
      %65 = sbr.rel (0) target = $region54
    $region53: #{red_forward.1} parent=1 // pred_region
      _
    $region54: #{red_forward.1} parent=1 // pred_fallthru
      _
    // Predicated region
    $region55: #{red_forward.1} parent=1 // pred_check
      _
    $region56: #{red_forward.1} parent=1 // pred_check_branch
      %67 = sbr.rel (0) target = $region58
    $region57: #{red_forward.1} parent=1 // pred_region
      _
    $region58: #{red_forward.1} parent=1 // pred_fallthru
      _
    // Predicated region
    $region59: #{red_forward.1} parent=1 // pred_check
      _
    $region60: #{red_forward.1} parent=1 // pred_check_branch
      %69 = sbr.rel (0) target = $region62
    $region61: #{red_forward.1} parent=1 // pred_region
      _
    $region62: #{red_forward.1} parent=1 // pred_fallthru
      _
    // Predicated region
    $region63: #{red_forward.1} parent=1 // pred_check
      _
    $region64: #{red_forward.1} parent=1 // pred_check_branch
      %71 = sbr.rel (0) target = $region66
    $region65: #{red_forward.1} parent=1 // pred_region
      _
    $region66: #{red_forward.1} parent=1 // pred_fallthru
      _
    // Predicated region
    $region67: #{red_forward.1} parent=1 // pred_check
      _
    $region68: #{red_forward.1} parent=1 // pred_check_branch
      %73 = sbr.rel (0) target = $region70
    $region69: #{red_forward.1} parent=1 // pred_region
      _
    $region70: #{red_forward.1} parent=1 // pred_fallthru
      _
    %v75 = vld [vmem:[#allocation3] sm:$0xff]
    %v76 = vld [vmem:[#allocation3 + $0x8] sm:$0xff]
    %v77 = vld [vmem:[#allocation3 + $0x10] sm:$0x11]
    %v78 = vld [vmem:[#allocation3 + $0x18] sm:$0x11]
    %v79 = vld [vmem:[%s1] sm:$0xf]
    %v80 = vld [vmem:[%s1 + $0x4] sm:$0xf]
    %v81 = vld [vmem:[%s2] sm:$0xff]
    %v82 = vld [vmem:[%s2 + $0x8] sm:$0x7f]
    %84 = vset.pattern.permute.xlu0 0
    %85 = vperm.xlu0 %84, %v81
    %v86 = vpop.permute.xlu0 %85
    %89 = vset.pattern.permute.xlu0 0
    %90 = vperm.xlu0 %89, %v82
    %v91 = vpop.permute.xlu0 %90
    %v95 = vunpack.c.l.b16 %v79
    %v96 = vunpack.c.l.b16 %v80
    %v97 = vpack.c.b16 %v96, %v95
    %v102 = vunpack.c.l.b16 %v75
    %v103 = vunpack.c.h.b16 %v75
    %v104 = vunpack.c.l.b16 %v76
    %v105 = vunpack.c.h.b16 %v76
    %v106 = vunpack.c.l.b16 %v77
    %v107 = vunpack.c.h.b16 %v77
    %v108 = vunpack.c.l.b16 %v78
    %v109 = vunpack.c.h.b16 %v78
    %v110 = vpack.c.b16 %v106, %v102
    %v111 = vpack.c.b16 %v107, %v103
    %v112 = vpack.c.b16 %v108, %v104
    %v113 = vpack.c.b16 %v109, %v105
    %vm114 = vcmask 80896
    %v116 = vsel %vm114, %v97, 0
    %vm118 = vcmask 1044480
    %v120 = vsel %vm118, %v110, 0
    %v123 = vsel %vm118, %v111, 0
    %v126 = vsel %vm118, %v112, 0
    %v129 = vsel %vm118, %v113, 0
    %131 = vmatprep.subr.bf16.mxu0 %v123
    %132 = vmatpush1.bf16.msra.mxu0 %v120
    %133 = vmatprep.subr.bf16.mxu0 0
    %134 = vmatpush1.bf16.msra.mxu0 0
    %135 = vmatprep.subr.bf16.mxu0 0
    %136 = vmatpush1.bf16.msra.mxu0 0
    %137 = vmatprep.subr.bf16.mxu0 0
    %138 = vmatpush1.bf16.msra.mxu0 0
    %139 = vmatprep.subr.bf16.mxu0 0
    %140 = vmatpush1.bf16.msra.mxu0 0
    %141 = vmatprep.subr.bf16.mxu0 0
    %142 = vmatpush1.bf16.msra.mxu0 0
    %143 = vmatprep.subr.bf16.mxu0 0
    %144 = vmatpush1.bf16.msra.mxu0 0
    %145 = vmatprep.subr.bf16.mxu0 0
    %146 = vmatpush1.bf16.msra.mxu0 0
    %147 = vmatprep.subr.bf16.mxu0 0
    %148 = vmatpush1.bf16.msra.mxu0 0
    %149 = vmatprep.subr.bf16.mxu0 0
    %150 = vmatpush1.bf16.msra.mxu0 0
    %151 = vmatprep.subr.bf16.mxu0 0
    %152 = vmatpush1.bf16.msra.mxu0 0
    %153 = vmatprep.subr.bf16.mxu0 0
    %154 = vmatpush1.bf16.msra.mxu0 0
    %155 = vmatprep.subr.bf16.mxu0 0
    %156 = vmatpush1.bf16.msra.mxu0 0
    %157 = vmatprep.subr.bf16.mxu0 0
    %158 = vmatpush1.bf16.msra.mxu0 0
    %159 = vmatprep.subr.bf16.mxu0 0
    %160 = vmatpush1.bf16.msra.mxu0 0
    %161 = vmatprep.subr.bf16.mxu0 0
    %162 = vmatpush1.bf16.msra.mxu0 0
    %163 = vmatprep.mubr.bf16.mxu0 0
    %164 = vmatmul.mubr.bf16.gmra.mrb[0].mxu0 %v116
    %v165 = vpop.f32.mrb[0].mxu0
    %v166 = vadd.f32 %v86, %v165
    %v167 = vpop.f32.mrb[0].mxu0
    %v168 = vadd.f32 %v86, %v167
    %v169 = vpop.f32.mrb[0].mxu0
    %v170 = vadd.f32 %v91, %v169
    %v171 = vpop.f32.mrb[0].mxu0
    %v172 = vadd.f32 %v91, %v171
    %173 = vdwg.mxu0
    %174 = vmatprep.subr.bf16.mxu0 %v129
    %175 = vmatpush1.bf16.msra.mxu0 %v126
    %176 = vmatprep.subr.bf16.mxu0 0
    %177 = vmatpush1.bf16.msra.mxu0 0
    %178 = vmatprep.subr.bf16.mxu0 0
    %179 = vmatpush1.bf16.msra.mxu0 0
    %180 = vmatprep.subr.bf16.mxu0 0
    %181 = vmatpush1.bf16.msra.mxu0 0
    %182 = vmatprep.subr.bf16.mxu0 0
    %183 = vmatpush1.bf16.msra.mxu0 0
    %184 = vmatprep.subr.bf16.mxu0 0
    %185 = vmatpush1.bf16.msra.mxu0 0
    %186 = vmatprep.subr.bf16.mxu0 0
    %187 = vmatpush1.bf16.msra.mxu0 0
    %188 = vmatprep.subr.bf16.mxu0 0
    %189 = vmatpush1.bf16.msra.mxu0 0
    %190 = vmatprep.subr.bf16.mxu0 0
    %191 = vmatpush1.bf16.msra.mxu0 0
    %192 = vmatprep.subr.bf16.mxu0 0
    %193 = vmatpush1.bf16.msra.mxu0 0
    %194 = vmatprep.subr.bf16.mxu0 0
    %195 = vmatpush1.bf16.msra.mxu0 0
    %196 = vmatprep.subr.bf16.mxu0 0
    %197 = vmatpush1.bf16.msra.mxu0 0
    %198 = vmatprep.subr.bf16.mxu0 0
    %199 = vmatpush1.bf16.msra.mxu0 0
    %200 = vmatprep.subr.bf16.mxu0 0
    %201 = vmatpush1.bf16.msra.mxu0 0
    %202 = vmatprep.subr.bf16.mxu0 0
    %203 = vmatpush1.bf16.msra.mxu0 0
    %204 = vmatprep.subr.bf16.mxu0 0
    %205 = vmatpush1.bf16.msra.mxu0 0
    %206 = vmatprep.mubr.bf16.mxu0 0
    %207 = vmatmul.mubr.bf16.gmra.mrb[0].mxu0 %v116
    %v208 = vpop.f32.mrb[0].mxu0
    %v209 = vadd.f32 %v86, %v208
    %v210 = vpop.f32.mrb[0].mxu0
    %v211 = vadd.f32 %v86, %v210
    %v212 = vpop.f32.mrb[0].mxu0
    %v213 = vadd.f32 %v91, %v212
    %v214 = vpop.f32.mrb[0].mxu0
    %v215 = vadd.f32 %v91, %v214
    %216 = vdwg.mxu0
    %v217 = vmul.f32 %v166, 0.5
    %v218 = vmul.f32 %v168, 0.5
    %v219 = vmul.f32 %v209, 0.5
    %v220 = vmul.f32 %v211, 0.5
    %v221 = vmul.f32 %v170, 0.5
    %v222 = vmul.f32 %v172, 0.5
    %v223 = vmul.f32 %v213, 0.5
    %v224 = vmul.f32 %v215, 0.5
    %v225 = vtanh.pop %v217
    %v226 = vtanh.pop %v218
    %v227 = vtanh.pop %v219
    %v228 = vtanh.pop %v220
    %v229 = vtanh.pop %v221
    %v230 = vtanh.pop %v222
    %v231 = vtanh.pop %v223
    %v232 = vtanh.pop %v224
    %v233 = vmul.f32 %v225, 0.5
    %v234 = vmul.f32 %v226, 0.5
    %v235 = vmul.f32 %v227, 0.5
    %v236 = vmul.f32 %v228, 0.5
    %v237 = vmul.f32 %v229, 0.5
    %v238 = vmul.f32 %v230, 0.5
    %v239 = vmul.f32 %v231, 0.5
    %v240 = vmul.f32 %v232, 0.5
    %v241 = vadd.f32 %v233, 0.5
    %v242 = vadd.f32 %v234, 0.5
    %v243 = vadd.f32 %v235, 0.5
    %v244 = vadd.f32 %v236, 0.5
    %v245 = vadd.f32 %v237, 0.5
    %v246 = vadd.f32 %v238, 0.5
    %v247 = vadd.f32 %v239, 0.5
    %v248 = vadd.f32 %v240, 0.5
    %v249 = vpack.c.bf16 %v245, %v241
    %v250 = vpack.c.bf16 %v246, %v242
    %v251 = vpack.c.bf16 %v247, %v243
    %v252 = vpack.c.bf16 %v248, %v244
    %v253 = vld [vmem:[%s3] sm:$0xf]
    %v254 = vld [vmem:[%s4] sm:$0xff]
    %256 = vset.pattern.permute.xlu0 0
    %257 = vperm.xlu0 %256, %v254
    %v258 = vpop.permute.xlu0 %257
    %vm260 = vcmask 121856
    %v262 = vsel %vm260, %v253, 0
    %vm264 = vcmask 1046528
    %vm265 = vcmask 1047552
    %v266 = vsel %vm264, 4294967295, 65535
    %v267 = vsel %vm265, %v266, 0
    %v269 = vand.u32 %v249, %v267
    %v272 = vand.u32 %v250, %v267
    %v275 = vand.u32 %v251, %v267
    %v278 = vand.u32 %v252, %v267
    %280 = vmatprep.subr.bf16.mxu0 %v272
    %281 = vmatpush1.bf16.msra.mxu0 %v269
    %282 = vmatprep.subr.bf16.mxu0 0
    %283 = vmatpush1.bf16.msra.mxu0 0
    %284 = vmatprep.subr.bf16.mxu0 0
    %285 = vmatpush1.bf16.msra.mxu0 0
    %286 = vmatprep.subr.bf16.mxu0 0
    %287 = vmatpush1.bf16.msra.mxu0 0
    %288 = vmatprep.subr.bf16.mxu0 0
    %289 = vmatpush1.bf16.msra.mxu0 0
    %290 = vmatprep.subr.bf16.mxu0 0
    %291 = vmatpush1.bf16.msra.mxu0 0
    %292 = vmatprep.subr.bf16.mxu0 0
    %293 = vmatpush1.bf16.msra.mxu0 0
    %294 = vmatprep.subr.bf16.mxu0 0
    %295 = vmatpush1.bf16.msra.mxu0 0
    %296 = vmatprep.subr.bf16.mxu0 0
    %297 = vmatpush1.bf16.msra.mxu0 0
    %298 = vmatprep.subr.bf16.mxu0 0
    %299 = vmatpush1.bf16.msra.mxu0 0
    %300 = vmatprep.subr.bf16.mxu0 0
    %301 = vmatpush1.bf16.msra.mxu0 0
    %302 = vmatprep.subr.bf16.mxu0 0
    %303 = vmatpush1.bf16.msra.mxu0 0
    %304 = vmatprep.subr.bf16.mxu0 0
    %305 = vmatpush1.bf16.msra.mxu0 0
    %306 = vmatprep.subr.bf16.mxu0 0
    %307 = vmatpush1.bf16.msra.mxu0 0
    %308 = vmatprep.subr.bf16.mxu0 0
    %309 = vmatpush1.bf16.msra.mxu0 0
    %310 = vmatprep.subr.bf16.mxu0 0
    %311 = vmatpush1.bf16.msra.mxu0 0
    %312 = vmatprep.mubr.bf16.mxu0 0
    %313 = vmatmul.mubr.bf16.gmra.mrb[0].mxu0 %v262
    %v314 = vpop.f32.mrb[0].mxu0
    %v315 = vadd.f32 %v258, %v314
    %v316 = vpop.f32.mrb[0].mxu0
    %v317 = vadd.f32 %v258, %v316
    %v318 = vpop.f32.mrb[0].mxu0
    %v319 = vpop.f32.mrb[0].mxu0
    %320 = vdwg.mxu0
    %321 = vmatprep.subr.bf16.mxu0 %v278
    %322 = vmatpush1.bf16.msra.mxu0 %v275
    %323 = vmatprep.subr.bf16.mxu0 0
    %324 = vmatpush1.bf16.msra.mxu0 0
    %325 = vmatprep.subr.bf16.mxu0 0
    %326 = vmatpush1.bf16.msra.mxu0 0
    %327 = vmatprep.subr.bf16.mxu0 0
    %328 = vmatpush1.bf16.msra.mxu0 0
    %329 = vmatprep.subr.bf16.mxu0 0
    %330 = vmatpush1.bf16.msra.mxu0 0
    %331 = vmatprep.subr.bf16.mxu0 0
    %332 = vmatpush1.bf16.msra.mxu0 0
    %333 = vmatprep.subr.bf16.mxu0 0
    %334 = vmatpush1.bf16.msra.mxu0 0
    %335 = vmatprep.subr.bf16.mxu0 0
    %336 = vmatpush1.bf16.msra.mxu0 0
    %337 = vmatprep.subr.bf16.mxu0 0
    %338 = vmatpush1.bf16.msra.mxu0 0
    %339 = vmatprep.subr.bf16.mxu0 0
    %340 = vmatpush1.bf16.msra.mxu0 0
    %341 = vmatprep.subr.bf16.mxu0 0
    %342 = vmatpush1.bf16.msra.mxu0 0
    %343 = vmatprep.subr.bf16.mxu0 0
    %344 = vmatpush1.bf16.msra.mxu0 0
    %345 = vmatprep.subr.bf16.mxu0 0
    %346 = vmatpush1.bf16.msra.mxu0 0
    %347 = vmatprep.subr.bf16.mxu0 0
    %348 = vmatpush1.bf16.msra.mxu0 0
    %349 = vmatprep.subr.bf16.mxu0 0
    %350 = vmatpush1.bf16.msra.mxu0 0
    %351 = vmatprep.subr.bf16.mxu0 0
    %352 = vmatpush1.bf16.msra.mxu0 0
    %353 = vmatprep.mubr.bf16.mxu0 0
    %354 = vmatmul.mubr.bf16.gmra.mrb[0].mxu0 %v262
    %v355 = vpop.f32.mrb[0].mxu0
    %v356 = vadd.f32 %v258, %v355
    %v357 = vpop.f32.mrb[0].mxu0
    %v358 = vadd.f32 %v258, %v357
    %v359 = vpop.f32.mrb[0].mxu0
    %v360 = vpop.f32.mrb[0].mxu0
    %361 = vdwg.mxu0
    %v362 = vmul.f32 %v315, 0.5
    %v363 = vmul.f32 %v317, 0.5
    %v364 = vmul.f32 %v356, 0.5
    %v365 = vmul.f32 %v358, 0.5
    %v366 = vtanh.pop %v362
    %v367 = vtanh.pop %v363
    %v368 = vtanh.pop %v364
    %v369 = vtanh.pop %v365
    %v370 = vmul.f32 %v366, 0.5
    %v371 = vmul.f32 %v367, 0.5
    %v372 = vmul.f32 %v368, 0.5
    %v373 = vmul.f32 %v369, 0.5
    %v374 = vadd.f32 %v370, 0.5
    %v375 = vadd.f32 %v371, 0.5
    %v376 = vadd.f32 %v372, 0.5
    %v377 = vadd.f32 %v373, 0.5
    %v378 = vpack.c.bf16 %v374, %v374
    %v379 = vpack.c.bf16 %v375, %v375
    %v380 = vpack.c.bf16 %v376, %v376
    %v381 = vpack.c.bf16 %v377, %v377
    %v382 = vld [vmem:[%s5] sm:$0x1]
    %v383 = vld [vmem:[#allocation2] sm:$0x1]
    %385 = vset.pattern.permute.xlu0 0
    %386 = vperm.xlu0 %385, %v383
    %v387 = vpop.permute.xlu0 %386
    %v389 = vlaneseq
    %v390 = vshrl.u32 %v389, 7
    %v391 = vsub.s32 0, %v390
    %v392 = vrot.slane %v387, %v391
    %vm393 = vcmask 64512
    %v395 = vsel %vm393, %v382, 0
    %vm397 = vcmask 1043456
    %v399 = vsel %vm397, %v378, 0
    %v402 = vsel %vm397, %v379, 0
    %v405 = vsel %vm397, %v380, 0
    %v408 = vsel %vm397, %v381, 0
    %410 = vmatprep.subr.bf16.mxu0 %v402
    %411 = vmatpush1.bf16.msra.mxu0 %v399
    %412 = vmatprep.subr.bf16.mxu0 0
    %413 = vmatpush1.bf16.msra.mxu0 0
    %414 = vmatprep.subr.bf16.mxu0 0
    %415 = vmatpush1.bf16.msra.mxu0 0
    %416 = vmatprep.subr.bf16.mxu0 0
    %417 = vmatpush1.bf16.msra.mxu0 0
    %418 = vmatprep.subr.bf16.mxu0 0
    %419 = vmatpush1.bf16.msra.mxu0 0
    %420 = vmatprep.subr.bf16.mxu0 0
    %421 = vmatpush1.bf16.msra.mxu0 0
    %422 = vmatprep.subr.bf16.mxu0 0
    %423 = vmatpush1.bf16.msra.mxu0 0
    %424 = vmatprep.subr.bf16.mxu0 0
    %425 = vmatpush1.bf16.msra.mxu0 0
    %426 = vmatprep.subr.bf16.mxu0 0
    %427 = vmatpush1.bf16.msra.mxu0 0
    %428 = vmatprep.subr.bf16.mxu0 0
    %429 = vmatpush1.bf16.msra.mxu0 0
    %430 = vmatprep.subr.bf16.mxu0 0
    %431 = vmatpush1.bf16.msra.mxu0 0
    %432 = vmatprep.subr.bf16.mxu0 0
    %433 = vmatpush1.bf16.msra.mxu0 0
    %434 = vmatprep.subr.bf16.mxu0 0
    %435 = vmatpush1.bf16.msra.mxu0 0
    %436 = vmatprep.subr.bf16.mxu0 0
    %437 = vmatpush1.bf16.msra.mxu0 0
    %438 = vmatprep.subr.bf16.mxu0 0
    %439 = vmatpush1.bf16.msra.mxu0 0
    %440 = vmatprep.subr.bf16.mxu0 0
    %441 = vmatpush1.bf16.msra.mxu0 0
    %442 = vmatprep.mubr.bf16.mxu0 0
    %443 = vmatmul.mubr.bf16.gmra.mrb[0].mxu0 %v395
    %v444 = vpop.f32.mrb[0].mxu0
    %v445 = vadd.f32 %v392, %v444
    %v446 = vpop.f32.mrb[0].mxu0
    %v447 = vadd.f32 %v392, %v446
    %v448 = vpop.f32.mrb[0].mxu0
    %v449 = vpop.f32.mrb[0].mxu0
    %450 = vdwg.mxu0
    %451 = vmatprep.subr.bf16.mxu0 %v408
    %452 = vmatpush1.bf16.msra.mxu0 %v405
    %453 = vmatprep.subr.bf16.mxu0 0
    %454 = vmatpush1.bf16.msra.mxu0 0
    %455 = vmatprep.subr.bf16.mxu0 0
    %456 = vmatpush1.bf16.msra.mxu0 0
    %457 = vmatprep.subr.bf16.mxu0 0
    %458 = vmatpush1.bf16.msra.mxu0 0
    %459 = vmatprep.subr.bf16.mxu0 0
    %460 = vmatpush1.bf16.msra.mxu0 0
    %461 = vmatprep.subr.bf16.mxu0 0
    %462 = vmatpush1.bf16.msra.mxu0 0
    %463 = vmatprep.subr.bf16.mxu0 0
    %464 = vmatpush1.bf16.msra.mxu0 0
    %465 = vmatprep.subr.bf16.mxu0 0
    %466 = vmatpush1.bf16.msra.mxu0 0
    %467 = vmatprep.subr.bf16.mxu0 0
    %468 = vmatpush1.bf16.msra.mxu0 0
    %469 = vmatprep.subr.bf16.mxu0 0
    %470 = vmatpush1.bf16.msra.mxu0 0
    %471 = vmatprep.subr.bf16.mxu0 0
    %472 = vmatpush1.bf16.msra.mxu0 0
    %473 = vmatprep.subr.bf16.mxu0 0
    %474 = vmatpush1.bf16.msra.mxu0 0
    %475 = vmatprep.subr.bf16.mxu0 0
    %476 = vmatpush1.bf16.msra.mxu0 0
    %477 = vmatprep.subr.bf16.mxu0 0
    %478 = vmatpush1.bf16.msra.mxu0 0
    %479 = vmatprep.subr.bf16.mxu0 0
    %480 = vmatpush1.bf16.msra.mxu0 0
    %481 = vmatprep.subr.bf16.mxu0 0
    %482 = vmatpush1.bf16.msra.mxu0 0
    %483 = vmatprep.mubr.bf16.mxu0 0
    %484 = vmatmul.mubr.bf16.gmra.mrb[0].mxu0 %v395
    %v485 = vpop.f32.mrb[0].mxu0
    %v486 = vadd.f32 %v392, %v485
    %v487 = vpop.f32.mrb[0].mxu0
    %v488 = vadd.f32 %v392, %v487
    %v489 = vpop.f32.mrb[0].mxu0
    %v490 = vpop.f32.mrb[0].mxu0
    %491 = vdwg.mxu0
    %v492 = vmul.f32 %v445, 0.5
    %v493 = vmul.f32 %v447, 0.5
    %v494 = vmul.f32 %v486, 0.5
    %v495 = vmul.f32 %v488, 0.5
    %v496 = vtanh.pop %v492
    %v497 = vtanh.pop %v493
    %v498 = vtanh.pop %v494
    %v499 = vtanh.pop %v495
    %v500 = vmul.f32 %v496, 0.5
    %v501 = vmul.f32 %v497, 0.5
    %v502 = vmul.f32 %v498, 0.5
    %v503 = vmul.f32 %v499, 0.5
    %v504 = vadd.f32 %v500, 0.5
    %v505 = vadd.f32 %v501, 0.5
    %v506 = vadd.f32 %v502, 0.5
    %v507 = vadd.f32 %v503, 0.5
    %v512 = vcombine.low %v504, %v505
    %v513 = vcombine.low %v506, %v507
    %v515 = vunpack.c.l.s4 1966171168
    %v516 = vunpack.c.0.s8 %v515
    %v517 = vlaneseq
    %v518 = vshrl.u32 %v517, 7
    %v519 = vsub.s32 %v516, %v518
    %v520 = vrot.slane %v512, %v519
    %v522 = vunpack.c.l.s4 1966171168
    %v523 = vunpack.c.0.s8 %v522
    %v524 = vlaneseq
    %v525 = vshrl.u32 %v524, 7
    %v526 = vsub.s32 %v523, %v525
    %v527 = vrot.slane %v513, %v526
    %v528 = vcombine.low %v520, %v527
    %v530 = vunpack.c.l.s4 1966171168
    %v531 = vunpack.c.0.s8 %v530
    %v532 = vlaneseq
    %v533 = vshrl.u32 %v532, 7
    %v534 = vsub.s32 %v531, %v533
    %v535 = vrot.slane %v528, %v534
    %v537 = vlaneseq
    %vm538 = vcmp.ge.s32.totalorder %v537, 0
    %vm539 = vcmp.lt.s32.totalorder %v537, 512
    %vm540 = vmand %vm538, %vm539
    %541 = vst.msk [vmem:[#allocation4] sm:$0xf] %vm540, %v535
    // Predicated region
    $region71: #{red_forward.1} parent=1 // pred_check
      _
    $region72: #{red_forward.1} parent=1 // pred_check_branch
      %543 = sbr.rel (0) target = $region74
    $region73: #{red_forward.1} parent=1 // pred_region
      %s545 = ssub.s32 64, 16
      %546 = vsyncadd [#allocation5], %s545
      %s548 = sshll.u32 [#allocation4], 4
      %s549 = int_to_ptr.vmem [resolvable:$true] %s548
      %551 = dma.vmem_to_hbm [thread:$0]  %s549, 16, %s7, [#allocation5]
    $region74: #{red_forward.1} parent=1 // pred_fallthru
      _
    // Predicated region
    $region75: #{red_forward.1} parent=1 // pred_check
      _
    $region76: #{red_forward.1} parent=1 // pred_check_branch
      %553 = sbr.rel (0) target = $region78
    $region77: #{red_forward.1} parent=1 // pred_region
      %554 = dma.done [#allocation5], 64
    $region78: #{red_forward.1} parent=1 // pred_fallthru
      _
    %555 = vsyncpa [#allocation5], 1

</llo_original>
